<compile_context>
chip_gen: v7x
topology: tpu7x:2x2x1
jax: 0.10.0
libtpu: 0.0.40
codegen_flags: <defaults>
</compile_context>

<pallas_src>
import functools
import math

import jax
import jax.numpy as jnp
from jax import lax
from jax.experimental import pallas as pl
from jax.experimental.pallas import tpu as pltpu


def _round_up(x, m):
    return ((x + m - 1) // m) * m


def _cdiv(a, b):
    return (a + b - 1) // b


# ---------------------------------------------------------------------------
# Pallas kernel: freq-arg dot -> sin -> (identity + sin|cos) dots -> LN -> ReLU -> Linear
# ---------------------------------------------------------------------------
def _ego3d_kernel(xyz_ref, wf_ref, bf_ref, wi_ref, bi_ref, w1sc_ref,
                  gamma_ref, beta_ref, w2_ref, b2_ref, out_ref,
                  *, eps, mxu_dtype):
    xyz = xyz_ref[...]                                                   # (TM, C) f32

    # Frequency arguments: (TM,C)f32 @ (C,arg_w)f32 + bias. The -center shift, *0.5 scale
    # and the +pi/2 phase for the cos half (cos x = sin(x + pi/2)) are folded into wf/bf.
    # MUST stay f32: args reach hundreds of radians.
    arg = jnp.dot(xyz, wf_ref[...], preferred_element_type=jnp.float32) + bf_ref[...]
    s = jnp.sin(arg).astype(mxu_dtype)                                   # sin in f32, cast for MXU

    # Identity (rank-C) branch of Linear1 as a cheap bf16 MXU pass; b1 (+ folded center) in f32.
    h = (jnp.dot(xyz.astype(mxu_dtype), wi_ref[...], preferred_element_type=jnp.float32)
         + bi_ref[...]
         + jnp.dot(s, w1sc_ref[...], preferred_element_type=jnp.float32))  # (TM, F) f32

    # LayerNorm with mean-shifted (two-pass) variance -- robust when |mean| >> std.
    mean = jnp.mean(h, axis=-1, keepdims=True)
    d = h - mean
    var = jnp.mean(d * d, axis=-1, keepdims=True)
    hn = d * lax.rsqrt(var + eps) * gamma_ref[...] + beta_ref[...]

    # ReLU + second Linear (bf16 operands, f32 accumulation).
    hr = jnp.maximum(hn, 0.0).astype(mxu_dtype)
    out_ref[...] = (jnp.dot(hr, w2_ref[...], preferred_element_type=jnp.float32)
                    + b2_ref[...]).astype(out_ref.dtype)


# ---------------------------------------------------------------------------
# Parameter construction (deterministic, mirrors the PyTorch module's init)
# ---------------------------------------------------------------------------
def init_params(key, in_channels=3, num_pos_feats=128, n_freqs=8, logscale=True):
    freq_out = in_channels * (2 * n_freqs + 1)
    k1, k2, k3, k4 = jax.random.split(key, 4)

    def xavier_uniform(k, shape, gain):          # torch Linear weight layout (out, in)
        fan_out, fan_in = shape
        a = gain * math.sqrt(6.0 / (fan_in + fan_out))
        return jax.random.uniform(k, shape, jnp.float32, -a, a)

    w1 = xavier_uniform(k1, (num_pos_feats, freq_out), gain=0.01)
    b1 = jax.random.uniform(k2, (num_pos_feats,), jnp.float32,
                            -1.0 / math.sqrt(freq_out), 1.0 / math.sqrt(freq_out))
    gamma = jnp.ones((num_pos_feats,), jnp.float32)
    beta = jnp.zeros((num_pos_feats,), jnp.float32)
    w2 = xavier_uniform(k3, (num_pos_feats, num_pos_feats), gain=0.01)
    b2 = jax.random.uniform(k4, (num_pos_feats,), jnp.float32,
                            -1.0 / math.sqrt(num_pos_feats), 1.0 / math.sqrt(num_pos_feats))

    if logscale:
        freq_bands = 2.0 ** jnp.linspace(0.0, n_freqs - 1, n_freqs)
    else:
        freq_bands = jnp.linspace(1.0, 2.0 ** (n_freqs - 1), n_freqs)
    center = jnp.tile(jnp.array([0.0, 0.0, 2.0], jnp.float32), in_channels // 3)

    return dict(w1=w1, b1=b1, gamma=gamma, beta=beta, w2=w2, b2=b2,
                freq_bands=freq_bands.astype(jnp.float32), center=center)


# ---------------------------------------------------------------------------
# One-time weight re-layout + affine folding (call once, reuse across forward calls)
# ---------------------------------------------------------------------------
def prepare_params(params, *, n_freqs=8, mxu_dtype=jnp.bfloat16):
    w1 = params["w1"].astype(jnp.float32)            # (F, C*per), torch layout (out, in)
    F, K = w1.shape
    nf = n_freqs
    per = 2 * nf + 1
    C = K // per
    assert C * per == K, "w1 in-dim must equal in_channels * (2*n_freqs + 1)"

    freq_bands = params["freq_bands"].astype(jnp.float32)
    center = params["center"].astype(jnp.float32).reshape(1, C)

    # Permute W1 columns into identity / sin / cos blocks (matches torch cat order per channel).
    w1t = w1.T                                        # (C*per, F)
    idx_id = jnp.array([c * per for c in range(C)], jnp.int32)
    idx_sin = jnp.array([c * per + 1 + k for c in range(C) for k in range(nf)], jnp.int32)
    idx_cos = jnp.array([c * per + 1 + nf + k for c in range(C) for k in range(nf)], jnp.int32)
    w1_id = w1t[idx_id]                               # (C, F)
    w1_sin = w1t[idx_sin]                             # (C*nf, F)
    w1_cos = w1t[idx_cos]                             # (C*nf, F)

    n_sc = 2 * C * nf                                 # sin + cos argument columns
    arg_w = _round_up(n_sc, 128)                      # pad to full lane tiles

    # Block-diagonal frequency expansion for the sin|cos args, with the *0.5 input scale folded.
    freq_blk = jnp.kron(jnp.eye(C, dtype=jnp.float32), freq_bands.reshape(1, nf))   # (C, C*nf)
    freq_exp = jnp.zeros((C, arg_w), jnp.float32)
    freq_exp = freq_exp.at[:, :C * nf].set(freq_blk)
    freq_exp = freq_exp.at[:, C * nf:n_sc].set(freq_blk)
    wf = 0.5 * freq_exp                               # (C, arg_w) f32
    phase = jnp.zeros((1, arg_w), jnp.float32).at[0, C * nf:n_sc].set(jnp.pi / 2.0)
    bf = phase - center @ wf                          # folds the -center shift

    # Identity (rank-C) branch with the same affine prelude folded in.
    wi_f32 = 0.5 * w1_id                              # (C, F)
    bi = params["b1"].reshape(1, F).astype(jnp.float32) - center @ wi_f32

    # Concatenated (sin|cos) weight block; rows beyond n_sc stay zero (args there are sin(0)=0).
    w1_sc = jnp.zeros((arg_w, F), jnp.float32)
    w1_sc = w1_sc.at[:C * nf].set(w1_sin).at[C * nf:n_sc].set(w1_cos)

    return dict(
        wf=wf, bf=bf,
        wi=wi_f32.astype(mxu_dtype), bi=bi,
        w1_sc=w1_sc.astype(mxu_dtype),
        gamma=params["gamma"].reshape(1, F).astype(jnp.float32),
        beta=params["beta"].reshape(1, F).astype(jnp.float32),
        w2=params["w2"].T.astype(mxu_dtype),          # (F, F) bf16 MXU operand
        b2=params["b2"].reshape(1, F).astype(jnp.float32),
    )


# ---------------------------------------------------------------------------
# Wrapper: tiling + pallas_call (expects prepared params from prepare_params)
# ---------------------------------------------------------------------------
def ego3d_position_embedding(xyz, prepared, *, tile_m_max=2048, min_row_steps=2,
                             out_dtype=jnp.float32, mxu_dtype=jnp.bfloat16):
    B, N, C = xyz.shape
    F = prepared["w2"].shape[1]
    arg_w = prepared["wf"].shape[1]
    assert prepared["wf"].shape[0] == C, "prepared params do not match xyz channel count"

    M = B * N
    x2 = xyz.reshape(M, C).astype(jnp.float32)

    # Tile selection: as large as possible (amortize ~0.35 us/grid-step), balanced so padding
    # waste is < 8 rows per step, and >= min_row_steps steps so both TCs get work on v7x
    # (the single "parallel" grid axis is what shards rows across TensorCores).
    steps = max(max(1, min_row_steps), _cdiv(M, tile_m_max))
    tile_m = max(8, _round_up(_cdiv(M, steps), 8))
    Mp = _round_up(M, tile_m)
    if Mp != M:
        x2 = jnp.pad(x2, ((0, Mp - M), (0, 0)))
    grid_m = Mp // tile_m

    # Constant weight/bias blocks: index_map never changes -> no re-DMA across grid steps.
    const = lambda shape: pl.BlockSpec(shape, lambda i: (0, 0))

    flops = 2 * Mp * (C * arg_w + C * F + arg_w * F + F * F) + 10 * Mp * F
    cost = pl.CostEstimate(flops=int(flops),
                           transcendentals=int(Mp * (arg_w + 1)),
                           bytes_accessed=int(Mp * C * 4 + Mp * F * 4
                                              + (arg_w * F + F * F + C * F) * 2))

    out = pl.pallas_call(
        functools.partial(_ego3d_kernel, eps=1e-5, mxu_dtype=mxu_dtype),
        out_shape=jax.ShapeDtypeStruct((Mp, F), out_dtype),
        grid=(grid_m,),
        in_specs=[
            pl.BlockSpec((tile_m, C), lambda i: (i, 0)),   # xyz rows (tiled over the grid)
            const((C, arg_w)),                             # wf   (f32: freq args stay f32)
            const((1, arg_w)),                             # bf   (phase + folded center)
            const((C, F)),                                 # wi   (bf16 identity block)
            const((1, F)),                                 # bi   (b1 + folded center)
            const((arg_w, F)),                             # W1 (sin|cos) block (bf16)
            const((1, F)),                                 # LN gamma
            const((1, F)),                                 # LN beta
            const((F, F)),                                 # W2^T (bf16)
            const((1, F)),                                 # b2
        ],
        out_specs=pl.BlockSpec((tile_m, F), lambda i: (i, 0)),
        compiler_params=pltpu.CompilerParams(
            dimension_semantics=("parallel",)),            # row tiles shard across TCs (v7x)
        cost_estimate=cost,
    )(x2, prepared["wf"], prepared["bf"], prepared["wi"], prepared["bi"],
      prepared["w1_sc"], prepared["gamma"], prepared["beta"],
      prepared["w2"], prepared["b2"])

    return out[:M].reshape(B, N, F)


# ---------------------------------------------------------------------------
# Pure-JAX reference (mirrors the PyTorch forward exactly, full f32)
# ---------------------------------------------------------------------------
def ego3d_reference(xyz, params):
    xyz_n = (xyz - params["center"]) / 2.0
    xyz_freq = xyz_n[..., None] * params["freq_bands"]
    enc = jnp.concatenate([xyz_n[..., None], jnp.sin(xyz_freq), jnp.cos(xyz_freq)], -1)
    enc = enc.reshape(*xyz.shape[:2], -1)
    h = enc @ params["w1"].T + params["b1"]
    mean = h.mean(-1, keepdims=True)
    var = ((h - mean) ** 2).mean(-1, keepdims=True)
    h = (h - mean) / jnp.sqrt(var + 1e-5) * params["gamma"] + params["beta"]
    h = jnp.maximum(h, 0.0)
    return h @ params["w2"].T + params["b2"]


if __name__ == "__main__":
    B, N, C = 2, 8, 3          # small (B, N, in_channels)
    F, NFREQ = 128, 8          # num_pos_feats (lane-aligned), n_freqs

    key = jax.random.PRNGKey(0)
    kx, kp = jax.random.split(key)
    params = init_params(kp, in_channels=C, num_pos_feats=F, n_freqs=NFREQ)
    prepared = prepare_params(params, n_freqs=NFREQ)   # one-time weight re-layout / folding

    # x,y in [-2,2], z in [0,4]
    xyz = jax.random.uniform(kx, (B, N, C), jnp.float32, -2.0, 2.0) \
        + jnp.array([0.0, 0.0, 2.0], jnp.float32)

    out = ego3d_position_embedding(xyz, prepared)
    out = jax.block_until_ready(out)

    ref = ego3d_reference(xyz, params)
    assert out.shape == (B, N, F), out.shape
    # Tolerance loosened slightly for bf16 MXU operands (f32 accumulation).
    assert jnp.allclose(out, ref, atol=2e-3, rtol=2e-3), float(jnp.abs(out - ref).max())

    print("KERNEL_OK")
</pallas_src>

<mosaic_0001>
module attributes {stable_mosaic.version = 11 : i64} {
  func.func @_ego3d_kernel(%arg0: i32, %arg1: memref<8x3xf32, #tpu.memory_space<vmem>>, %arg2: memref<3x128xf32, #tpu.memory_space<vmem>>, %arg3: memref<1x128xf32, #tpu.memory_space<vmem>>, %arg4: memref<3x128xbf16, #tpu.memory_space<vmem>>, %arg5: memref<1x128xf32, #tpu.memory_space<vmem>>, %arg6: memref<128x128xbf16, #tpu.memory_space<vmem>>, %arg7: memref<1x128xf32, #tpu.memory_space<vmem>>, %arg8: memref<1x128xf32, #tpu.memory_space<vmem>>, %arg9: memref<128x128xbf16, #tpu.memory_space<vmem>>, %arg10: memref<1x128xf32, #tpu.memory_space<vmem>>, %arg11: memref<8x128xf32, #tpu.memory_space<vmem>>) attributes {dimension_semantics = [#tpu.dimension_semantics<parallel>], iteration_bounds = array<i64: 2>, scalar_prefetch = 0 : i64, scratch_operands = 0 : i64, tpu.core_type = #tpu.core_type<tc>, window_params = [{transform_indices = @transform_0, window_bounds = array<i64: 8, 3>}, {pipeline_mode = #tpu.pipeline_mode<synchronous>, transform_indices = @transform_1, window_bounds = array<i64: 3, 128>}, {pipeline_mode = #tpu.pipeline_mode<synchronous>, transform_indices = @transform_2, window_bounds = array<i64: 1, 128>}, {pipeline_mode = #tpu.pipeline_mode<synchronous>, transform_indices = @transform_3, window_bounds = array<i64: 3, 128>}, {pipeline_mode = #tpu.pipeline_mode<synchronous>, transform_indices = @transform_4, window_bounds = array<i64: 1, 128>}, {pipeline_mode = #tpu.pipeline_mode<synchronous>, transform_indices = @transform_5, window_bounds = array<i64: 128, 128>}, {pipeline_mode = #tpu.pipeline_mode<synchronous>, transform_indices = @transform_6, window_bounds = array<i64: 1, 128>}, {pipeline_mode = #tpu.pipeline_mode<synchronous>, transform_indices = @transform_7, window_bounds = array<i64: 1, 128>}, {pipeline_mode = #tpu.pipeline_mode<synchronous>, transform_indices = @transform_8, window_bounds = array<i64: 128, 128>}, {pipeline_mode = #tpu.pipeline_mode<synchronous>, transform_indices = @transform_9, window_bounds = array<i64: 1, 128>}, {transform_indices = @transform_10, window_bounds = array<i64: 8, 128>}]} {
    %c0 = arith.constant 0 : index
    %c0_0 = arith.constant 0 : index
    %0 = vector.load %arg1[%c0, %c0_0] : memref<8x3xf32, #tpu.memory_space<vmem>>, vector<8x3xf32>
    %c0_1 = arith.constant 0 : index
    %c0_2 = arith.constant 0 : index
    %1 = vector.load %arg2[%c0_1, %c0_2] : memref<3x128xf32, #tpu.memory_space<vmem>>, vector<3x128xf32>
    %cst = arith.constant dense<0.000000e+00> : vector<8x128xf32>
    %2 = tpu.matmul %0, %1, %cst {dimension_numbers = #tpu.dot_dimension_numbers<[1], [0], [0], [1], [0, 0, 1, 1], [], []>} : vector<8x3xf32>, vector<3x128xf32>, vector<8x128xf32> -> vector<8x128xf32>
    %c0_3 = arith.constant 0 : index
    %c0_4 = arith.constant 0 : index
    %3 = vector.load %arg3[%c0_3, %c0_4] : memref<1x128xf32, #tpu.memory_space<vmem>>, vector<1x128xf32>
    %4 = vector.broadcast %3 : vector<1x128xf32> to vector<8x128xf32>
    %5 = arith.addf %2, %4 : vector<8x128xf32>
    %6 = math.sin %5 : vector<8x128xf32>
    %7 = arith.truncf %6 : vector<8x128xf32> to vector<8x128xbf16>
    %8 = arith.truncf %0 : vector<8x3xf32> to vector<8x3xbf16>
    %c0_5 = arith.constant 0 : index
    %c0_6 = arith.constant 0 : index
    %9 = vector.load %arg4[%c0_5, %c0_6] : memref<3x128xbf16, #tpu.memory_space<vmem>>, vector<3x128xbf16>
    %cst_7 = arith.constant dense<0.000000e+00> : vector<8x128xf32>
    %10 = tpu.matmul %8, %9, %cst_7 {dimension_numbers = #tpu.dot_dimension_numbers<[1], [0], [0], [1], [0, 0, 1, 1], [], []>} : vector<8x3xbf16>, vector<3x128xbf16>, vector<8x128xf32> -> vector<8x128xf32>
    %c0_8 = arith.constant 0 : index
    %c0_9 = arith.constant 0 : index
    %11 = vector.load %arg5[%c0_8, %c0_9] : memref<1x128xf32, #tpu.memory_space<vmem>>, vector<1x128xf32>
    %12 = vector.broadcast %11 : vector<1x128xf32> to vector<8x128xf32>
    %13 = arith.addf %10, %12 : vector<8x128xf32>
    %c0_10 = arith.constant 0 : index
    %c0_11 = arith.constant 0 : index
    %14 = vector.load %arg6[%c0_10, %c0_11] : memref<128x128xbf16, #tpu.memory_space<vmem>>, vector<128x128xbf16>
    %cst_12 = arith.constant dense<0.000000e+00> : vector<8x128xf32>
    %15 = tpu.matmul %7, %14, %cst_12 {dimension_numbers = #tpu.dot_dimension_numbers<[1], [0], [0], [1], [0, 0, 1, 1], [], []>} : vector<8x128xbf16>, vector<128x128xbf16>, vector<8x128xf32> -> vector<8x128xf32>
    %16 = arith.addf %13, %15 : vector<8x128xf32>
    %cst_13 = arith.constant dense<0.000000e+00> : vector<8xf32>
    %17 = vector.multi_reduction <add>, %16, %cst_13 [1] : vector<8x128xf32> to vector<8xf32>
    %18 = vector.shape_cast %17 : vector<8xf32> to vector<8x1xf32>
    %cst_14 = arith.constant 1.280000e+02 : f32
    %19 = vector.broadcast %cst_14 : f32 to vector<8x1xf32>
    %20 = arith.divf %18, %19 : vector<8x1xf32>
    %21 = vector.broadcast %20 : vector<8x1xf32> to vector<8x128xf32>
    %22 = arith.subf %16, %21 : vector<8x128xf32>
    %23 = arith.mulf %22, %22 : vector<8x128xf32>
    %cst_15 = arith.constant dense<0.000000e+00> : vector<8xf32>
    %24 = vector.multi_reduction <add>, %23, %cst_15 [1] : vector<8x128xf32> to vector<8xf32>
    %25 = vector.shape_cast %24 : vector<8xf32> to vector<8x1xf32>
    %cst_16 = arith.constant 1.280000e+02 : f32
    %26 = vector.broadcast %cst_16 : f32 to vector<8x1xf32>
    %27 = arith.divf %25, %26 : vector<8x1xf32>
    %cst_17 = arith.constant 9.99999974E-6 : f32
    %28 = vector.broadcast %cst_17 : f32 to vector<8x1xf32>
    %29 = arith.addf %27, %28 : vector<8x1xf32>
    %30 = math.rsqrt %29 : vector<8x1xf32>
    %31 = vector.broadcast %30 : vector<8x1xf32> to vector<8x128xf32>
    %32 = arith.mulf %22, %31 : vector<8x128xf32>
    %c0_18 = arith.constant 0 : index
    %c0_19 = arith.constant 0 : index
    %33 = vector.load %arg7[%c0_18, %c0_19] : memref<1x128xf32, #tpu.memory_space<vmem>>, vector<1x128xf32>
    %34 = vector.broadcast %33 : vector<1x128xf32> to vector<8x128xf32>
    %35 = arith.mulf %32, %34 : vector<8x128xf32>
    %c0_20 = arith.constant 0 : index
    %c0_21 = arith.constant 0 : index
    %36 = vector.load %arg8[%c0_20, %c0_21] : memref<1x128xf32, #tpu.memory_space<vmem>>, vector<1x128xf32>
    %37 = vector.broadcast %36 : vector<1x128xf32> to vector<8x128xf32>
    %38 = arith.addf %35, %37 : vector<8x128xf32>
    %cst_22 = arith.constant 0.000000e+00 : f32
    %39 = vector.broadcast %cst_22 : f32 to vector<8x128xf32>
    %40 = arith.maximumf %38, %39 : vector<8x128xf32>
    %41 = arith.truncf %40 : vector<8x128xf32> to vector<8x128xbf16>
    %c0_23 = arith.constant 0 : index
    %c0_24 = arith.constant 0 : index
    %42 = vector.load %arg9[%c0_23, %c0_24] : memref<128x128xbf16, #tpu.memory_space<vmem>>, vector<128x128xbf16>
    %cst_25 = arith.constant dense<0.000000e+00> : vector<8x128xf32>
    %43 = tpu.matmul %41, %42, %cst_25 {dimension_numbers = #tpu.dot_dimension_numbers<[1], [0], [0], [1], [0, 0, 1, 1], [], []>} : vector<8x128xbf16>, vector<128x128xbf16>, vector<8x128xf32> -> vector<8x128xf32>
    %c0_26 = arith.constant 0 : index
    %c0_27 = arith.constant 0 : index
    %44 = vector.load %arg10[%c0_26, %c0_27] : memref<1x128xf32, #tpu.memory_space<vmem>>, vector<1x128xf32>
    %45 = vector.broadcast %44 : vector<1x128xf32> to vector<8x128xf32>
    %46 = arith.addf %43, %45 : vector<8x128xf32>
    %c0_28 = arith.constant 0 : index
    %c0_29 = arith.constant 0 : index
    %47 = vector.load %arg11[%c0_28, %c0_29] : memref<8x128xf32, #tpu.memory_space<vmem>>, vector<8x128xf32>
    tpu.vector_store %arg11[%c0_28, %c0_29], %46 {strides = array<i32>} : memref<8x128xf32, #tpu.memory_space<vmem>>, vector<8x128xf32>,
    return
  }
  func.func @transform_0(%arg0: i32) -> (i32, i32) {
    %c0_i32 = arith.constant 0 : i32
    %c0_i32_0 = arith.constant 0 : i32
    return %arg0, %c0_i32 : i32, i32
  }
  func.func @transform_1(%arg0: i32) -> (i32, i32) {
    %c0_i32 = arith.constant 0 : i32
    %c0_i32_0 = arith.constant 0 : i32
    %c0_i32_1 = arith.constant 0 : i32
    return %c0_i32, %c0_i32_0 : i32, i32
  }
  func.func @transform_2(%arg0: i32) -> (i32, i32) {
    %c0_i32 = arith.constant 0 : i32
    %c0_i32_0 = arith.constant 0 : i32
    %c0_i32_1 = arith.constant 0 : i32
    return %c0_i32, %c0_i32_0 : i32, i32
  }
  func.func @transform_3(%arg0: i32) -> (i32, i32) {
    %c0_i32 = arith.constant 0 : i32
    %c0_i32_0 = arith.constant 0 : i32
    %c0_i32_1 = arith.constant 0 : i32
    return %c0_i32, %c0_i32_0 : i32, i32
  }
  func.func @transform_4(%arg0: i32) -> (i32, i32) {
    %c0_i32 = arith.constant 0 : i32
    %c0_i32_0 = arith.constant 0 : i32
    %c0_i32_1 = arith.constant 0 : i32
    return %c0_i32, %c0_i32_0 : i32, i32
  }
  func.func @transform_5(%arg0: i32) -> (i32, i32) {
    %c0_i32 = arith.constant 0 : i32
    %c0_i32_0 = arith.constant 0 : i32
    %c0_i32_1 = arith.constant 0 : i32
    return %c0_i32, %c0_i32_0 : i32, i32
  }
  func.func @transform_6(%arg0: i32) -> (i32, i32) {
    %c0_i32 = arith.constant 0 : i32
    %c0_i32_0 = arith.constant 0 : i32
    %c0_i32_1 = arith.constant 0 : i32
    return %c0_i32, %c0_i32_0 : i32, i32
  }
  func.func @transform_7(%arg0: i32) -> (i32, i32) {
    %c0_i32 = arith.constant 0 : i32
    %c0_i32_0 = arith.constant 0 : i32
    %c0_i32_1 = arith.constant 0 : i32
    return %c0_i32, %c0_i32_0 : i32, i32
  }
  func.func @transform_8(%arg0: i32) -> (i32, i32) {
    %c0_i32 = arith.constant 0 : i32
    %c0_i32_0 = arith.constant 0 : i32
    %c0_i32_1 = arith.constant 0 : i32
    return %c0_i32, %c0_i32_0 : i32, i32
  }
  func.func @transform_9(%arg0: i32) -> (i32, i32) {
    %c0_i32 = arith.constant 0 : i32
    %c0_i32_0 = arith.constant 0 : i32
    %c0_i32_1 = arith.constant 0 : i32
    return %c0_i32, %c0_i32_0 : i32, i32
  }
  func.func @transform_10(%arg0: i32) -> (i32, i32) {
    %c0_i32 = arith.constant 0 : i32
    %c0_i32_0 = arith.constant 0 : i32
    return %arg0, %c0_i32 : i32, i32
  }
}

</mosaic_0001>

<llo_original>
// kernel: tpu_custom_call.1
$region0: #{tpu_custom_call.1}
  #allocation0 [shape = 'u32[]', space=smem, size = 0x4, offset = 0x4, fixed_abs, tag = 'smem constant byte address 0x4 - core index']
  #allocation1 [shape = 'u32[144,128]{1,0:T(1,128)}', space=vmem, size = 0x12000, scoped, tag = 'internal scratch']
  %s0 = inlined_call_operand.vmem [shape: f32[16,3], index: 0, kind: input, shape index: {}]
  %s1 = inlined_call_operand.vmem [shape: f32[3,128], index: 1, kind: input, shape index: {}]
  %s2 = inlined_call_operand.vmem [shape: f32[1,128], index: 2, kind: input, shape index: {}]
  %s3 = inlined_call_operand.vmem [shape: bf16[3,128], index: 3, kind: input, shape index: {}]
  %s4 = inlined_call_operand.vmem [shape: f32[1,128], index: 4, kind: input, shape index: {}]
  %s5 = inlined_call_operand.hbm [shape: bf16[128,128], index: 5, kind: input, shape index: {}]
  %s6 = inlined_call_operand.vmem [shape: f32[1,128], index: 6, kind: input, shape index: {}]
  %s7 = inlined_call_operand.vmem [shape: f32[1,128], index: 7, kind: input, shape index: {}]
  %s8 = inlined_call_operand.hbm [shape: bf16[128,128], index: 8, kind: input, shape index: {}]
  %s9 = inlined_call_operand.vmem [shape: f32[1,128], index: 9, kind: input, shape index: {}]
  %s10 = inlined_call_operand.hbm [shape: f32[16,128], index: 10, kind: output, shape index: {}]
  %s11 = sld [smem:[#allocation0]]
  $region81: #{tpu_custom_call.1} parent=0
    _
  %s13 = ssub.s32 1, %s11
  %s14 = scalar_select 0, %s13, %s11
  $region1: #{tpu_custom_call.1} parent=0
    #allocation2 [shape = 'u8[32768]{0}', space=vmem, size = 0x8000, scoped, tag = 'input window, operand 5, single buffered']
    #allocation3 [shape = 's32[2]{0}', space=sflag, size = 0x8, scoped, tag = 'scoped memory for tpu_custom_call.1']
    #allocation4 [shape = 's32[2]{0}', space=sflag, size = 0x8, scoped, tag = 'scoped memory for tpu_custom_call.1']
    #allocation5 [shape = 'u8[32768]{0}', space=vmem, size = 0x8000, scoped, tag = 'input window, operand 8, single buffered']
    #allocation6 [shape = 's32[1]{0}', space=sflag, size = 0x4, scoped, tag = 'scoped memory for tpu_custom_call.1']
    #allocation7 [shape = 'u8[8192]{0}', space=vmem, size = 0x2000, scoped, tag = 'output window, operand 0']
    %15 = vsyncpa [#allocation3], 0
    %16 = vsyncpa [#allocation6], 0
    %17 = vsyncpa [#allocation4], 0
    %s18 = scalar_lea.sflag [#allocation4], 1
    %19 = vsyncpa %s18, 0
    loop: start=0, step=1, limit=4
    $region2: #{tpu_custom_call.1} parent=1 // loop_pre_header
      _
    $region3: #{tpu_custom_call.1} parent=1 // loop_header
      %s21 = sphi 0, %s25
      %p22 = scmp.ge.s32.totalorder %s21, 4
      %s31 = sphi 0, %s33
      %s34 = sphi 0, %s31
      %s35 = sphi 0, %s34
      %s51 = sphi 0, %s35
      %s55 = sphi 0, %s55
      %s57 = sphi 0, %s55
      %s58 = sphi 0, %s57
      %s72 = sphi 0, %s58
      %s76 = sphi 0, %s76
      %s78 = sphi 0, %s76
      %s79 = sphi 0, %s78
      %s93 = sphi 0, %s79
      %s97 = sphi 0, %s97
      %s99 = sphi 0, %s97
      %s100 = sphi 0, %s99
      %s114 = sphi 0, %s100
      %s118 = sphi 0, %s118
      %s120 = sphi 0, %s118
      %s121 = sphi 0, %s120
      %s135 = sphi 0, %s121
      %s139 = sphi 0, %s139
      %s141 = sphi 0, %s139
      %s142 = sphi 0, %s141
      %s156 = sphi 0, %s142
      %s160 = sphi 0, %s160
      %s162 = sphi 0, %s160
      %s163 = sphi 0, %s162
      %s177 = sphi 0, %s163
      %s181 = sphi 0, %s181
      %s183 = sphi 0, %s181
      %s184 = sphi 0, %s183
      %s198 = sphi 0, %s184
      %s202 = sphi 0, %s202
      %s204 = sphi 0, %s202
      %s205 = sphi 0, %s204
      %s219 = sphi 0, %s205
      %s223 = sphi 0, %s223
      %s225 = sphi 0, %s223
      %s226 = sphi 0, %s225
      %s240 = sphi 0, %s226
      %s246 = sphi 0, %s248
      %s249 = sphi 0, %s246
      %s250 = sphi 0, %s249
      %s266 = sphi 0, %s250
    $region4: #{tpu_custom_call.1} parent=1 // loop_header_branch
      %24 = sbr.rel (%p22) target = $region8
    $region5: #{tpu_custom_call.1} parent=1 // loop_body
      %s26 = ssub.s32 %s21, 1
      %s27 = ssub.s32 %s21, 2
      %s28 = sadd.s32 %s21, 1
      %s29 = ssub.s32 %s21, %s28
      %p30 = scmp.eq.s32.totalorder %s29, 0
      %s32 = sadd.s32 %s31, 1
      %s33 = scalar_select %p30, %s31, %s32
      %p36 = pneg %p30
      %p37 = scmp.eq.s32.totalorder %s21, 1
      %p38 = por %p36, %p37
      %p39 = scmp.ne.s32.totalorder %s31, %s34
      %p40 = scmp.eq.s32.totalorder %s21, 0
      %p41 = por %p39, %p40
      %p42 = scmp.ne.s32.totalorder %s31, %s34
      %p43 = scmp.eq.s32.totalorder %s26, 1
      %p44 = por %p42, %p43
      %p45 = scmp.ne.s32.totalorder %s34, %s35
      %p46 = scmp.eq.s32.totalorder %s26, 0
      %p47 = por %p45, %p46
      %p48 = scmp.ne.s32.totalorder %s34, %s35
      %p49 = scmp.eq.s32.totalorder %s27, 1
      %p50 = por %p48, %p49
      %p52 = scmp.ne.s32.totalorder %s35, %s51
      %p53 = scmp.eq.s32.totalorder %s27, 0
      %p54 = por %p52, %p53
      %s56 = sadd.s32 %s55, 1
      %p59 = scmp.eq.s32.totalorder %s21, 1
      %p60 = scmp.ne.s32.totalorder %s55, %s57
      %p61 = scmp.eq.s32.totalorder %s21, 0
      %p62 = por %p60, %p61
      %p63 = scmp.ne.s32.totalorder %s55, %s57
      %p64 = scmp.eq.s32.totalorder %s26, 1
      %p65 = por %p63, %p64
      %p66 = scmp.ne.s32.totalorder %s57, %s58
      %p67 = scmp.eq.s32.totalorder %s26, 0
      %p68 = por %p66, %p67
      %p69 = scmp.ne.s32.totalorder %s57, %s58
      %p70 = scmp.eq.s32.totalorder %s27, 1
      %p71 = por %p69, %p70
      %p73 = scmp.ne.s32.totalorder %s58, %s72
      %p74 = scmp.eq.s32.totalorder %s27, 0
      %p75 = por %p73, %p74
      %s77 = sadd.s32 %s76, 1
      %p80 = scmp.eq.s32.totalorder %s21, 1
      %p81 = scmp.ne.s32.totalorder %s76, %s78
      %p82 = scmp.eq.s32.totalorder %s21, 0
      %p83 = por %p81, %p82
      %p84 = scmp.ne.s32.totalorder %s76, %s78
      %p85 = scmp.eq.s32.totalorder %s26, 1
      %p86 = por %p84, %p85
      %p87 = scmp.ne.s32.totalorder %s78, %s79
      %p88 = scmp.eq.s32.totalorder %s26, 0
      %p89 = por %p87, %p88
      %p90 = scmp.ne.s32.totalorder %s78, %s79
      %p91 = scmp.eq.s32.totalorder %s27, 1
      %p92 = por %p90, %p91
      %p94 = scmp.ne.s32.totalorder %s79, %s93
      %p95 = scmp.eq.s32.totalorder %s27, 0
      %p96 = por %p94, %p95
      %s98 = sadd.s32 %s97, 1
      %p101 = scmp.eq.s32.totalorder %s21, 1
      %p102 = scmp.ne.s32.totalorder %s97, %s99
      %p103 = scmp.eq.s32.totalorder %s21, 0
      %p104 = por %p102, %p103
      %p105 = scmp.ne.s32.totalorder %s97, %s99
      %p106 = scmp.eq.s32.totalorder %s26, 1
      %p107 = por %p105, %p106
      %p108 = scmp.ne.s32.totalorder %s99, %s100
      %p109 = scmp.eq.s32.totalorder %s26, 0
      %p110 = por %p108, %p109
      %p111 = scmp.ne.s32.totalorder %s99, %s100
      %p112 = scmp.eq.s32.totalorder %s27, 1
      %p113 = por %p111, %p112
      %p115 = scmp.ne.s32.totalorder %s100, %s114
      %p116 = scmp.eq.s32.totalorder %s27, 0
      %p117 = por %p115, %p116
      %s119 = sadd.s32 %s118, 1
      %p122 = scmp.eq.s32.totalorder %s21, 1
      %p123 = scmp.ne.s32.totalorder %s118, %s120
      %p124 = scmp.eq.s32.totalorder %s21, 0
      %p125 = por %p123, %p124
      %p126 = scmp.ne.s32.totalorder %s118, %s120
      %p127 = scmp.eq.s32.totalorder %s26, 1
      %p128 = por %p126, %p127
      %p129 = scmp.ne.s32.totalorder %s120, %s121
      %p130 = scmp.eq.s32.totalorder %s26, 0
      %p131 = por %p129, %p130
      %p132 = scmp.ne.s32.totalorder %s120, %s121
      %p133 = scmp.eq.s32.totalorder %s27, 1
      %p134 = por %p132, %p133
      %p136 = scmp.ne.s32.totalorder %s121, %s135
      %p137 = scmp.eq.s32.totalorder %s27, 0
      %p138 = por %p136, %p137
      %s140 = sadd.s32 %s139, 1
      %p143 = scmp.eq.s32.totalorder %s21, 1
      %p144 = scmp.ne.s32.totalorder %s139, %s141
      %p145 = scmp.eq.s32.totalorder %s21, 0
      %p146 = por %p144, %p145
      %p147 = scmp.ne.s32.totalorder %s139, %s141
      %p148 = scmp.eq.s32.totalorder %s26, 1
      %p149 = por %p147, %p148
      %p150 = scmp.ne.s32.totalorder %s141, %s142
      %p151 = scmp.eq.s32.totalorder %s26, 0
      %p152 = por %p150, %p151
      %p153 = scmp.ne.s32.totalorder %s141, %s142
      %p154 = scmp.eq.s32.totalorder %s27, 1
      %p155 = por %p153, %p154
      %p157 = scmp.ne.s32.totalorder %s142, %s156
      %p158 = scmp.eq.s32.totalorder %s27, 0
      %p159 = por %p157, %p158
      %s161 = sadd.s32 %s160, 1
      %p164 = scmp.eq.s32.totalorder %s21, 1
      %p165 = scmp.ne.s32.totalorder %s160, %s162
      %p166 = scmp.eq.s32.totalorder %s21, 0
      %p167 = por %p165, %p166
      %p168 = scmp.ne.s32.totalorder %s160, %s162
      %p169 = scmp.eq.s32.totalorder %s26, 1
      %p170 = por %p168, %p169
      %p171 = scmp.ne.s32.totalorder %s162, %s163
      %p172 = scmp.eq.s32.totalorder %s26, 0
      %p173 = por %p171, %p172
      %p174 = scmp.ne.s32.totalorder %s162, %s163
      %p175 = scmp.eq.s32.totalorder %s27, 1
      %p176 = por %p174, %p175
      %p178 = scmp.ne.s32.totalorder %s163, %s177
      %p179 = scmp.eq.s32.totalorder %s27, 0
      %p180 = por %p178, %p179
      %s182 = sadd.s32 %s181, 1
      %p185 = scmp.eq.s32.totalorder %s21, 1
      %p186 = scmp.ne.s32.totalorder %s181, %s183
      %p187 = scmp.eq.s32.totalorder %s21, 0
      %p188 = por %p186, %p187
      %p189 = scmp.ne.s32.totalorder %s181, %s183
      %p190 = scmp.eq.s32.totalorder %s26, 1
      %p191 = por %p189, %p190
      %p192 = scmp.ne.s32.totalorder %s183, %s184
      %p193 = scmp.eq.s32.totalorder %s26, 0
      %p194 = por %p192, %p193
      %p195 = scmp.ne.s32.totalorder %s183, %s184
      %p196 = scmp.eq.s32.totalorder %s27, 1
      %p197 = por %p195, %p196
      %p199 = scmp.ne.s32.totalorder %s184, %s198
      %p200 = scmp.eq.s32.totalorder %s27, 0
      %p201 = por %p199, %p200
      %s203 = sadd.s32 %s202, 1
      %p206 = scmp.eq.s32.totalorder %s21, 1
      %p207 = scmp.ne.s32.totalorder %s202, %s204
      %p208 = scmp.eq.s32.totalorder %s21, 0
      %p209 = por %p207, %p208
      %p210 = scmp.ne.s32.totalorder %s202, %s204
      %p211 = scmp.eq.s32.totalorder %s26, 1
      %p212 = por %p210, %p211
      %p213 = scmp.ne.s32.totalorder %s204, %s205
      %p214 = scmp.eq.s32.totalorder %s26, 0
      %p215 = por %p213, %p214
      %p216 = scmp.ne.s32.totalorder %s204, %s205
      %p217 = scmp.eq.s32.totalorder %s27, 1
      %p218 = por %p216, %p217
      %p220 = scmp.ne.s32.totalorder %s205, %s219
      %p221 = scmp.eq.s32.totalorder %s27, 0
      %p222 = por %p220, %p221
      %s224 = sadd.s32 %s223, 1
      %p227 = scmp.eq.s32.totalorder %s21, 1
      %p228 = scmp.ne.s32.totalorder %s223, %s225
      %p229 = scmp.eq.s32.totalorder %s21, 0
      %p230 = por %p228, %p229
      %p231 = scmp.ne.s32.totalorder %s223, %s225
      %p232 = scmp.eq.s32.totalorder %s26, 1
      %p233 = por %p231, %p232
      %p234 = scmp.ne.s32.totalorder %s225, %s226
      %p235 = scmp.eq.s32.totalorder %s26, 0
      %p236 = por %p234, %p235
      %p237 = scmp.ne.s32.totalorder %s225, %s226
      %p238 = scmp.eq.s32.totalorder %s27, 1
      %p239 = por %p237, %p238
      %p241 = scmp.ne.s32.totalorder %s226, %s240
      %p242 = scmp.eq.s32.totalorder %s27, 0
      %p243 = por %p241, %p242
      %s244 = ssub.s32 %s21, %s28
      %p245 = scmp.eq.s32.totalorder %s244, 0
      %s247 = sadd.s32 %s246, 1
      %s248 = scalar_select %p245, %s246, %s247
      %p251 = pneg %p245
      %p252 = scmp.eq.s32.totalorder %s21, 1
      %p253 = por %p251, %p252
      %p254 = scmp.ne.s32.totalorder %s246, %s249
      %p255 = scmp.eq.s32.totalorder %s21, 0
      %p256 = por %p254, %p255
      %p257 = scmp.ne.s32.totalorder %s246, %s249
      %p258 = scmp.eq.s32.totalorder %s26, 1
      %p259 = por %p257, %p258
      %p260 = scmp.ne.s32.totalorder %s249, %s250
      %p261 = scmp.eq.s32.totalorder %s26, 0
      %p262 = por %p260, %p261
      %p263 = scmp.ne.s32.totalorder %s249, %s250
      %p264 = scmp.eq.s32.totalorder %s27, 1
      %p265 = por %p263, %p264
      %p267 = scmp.ne.s32.totalorder %s250, %s266
      %p268 = scmp.eq.s32.totalorder %s27, 0
      %p269 = por %p267, %p268
      %p270 = scmp.le.s32.totalorder 1, %s21
      %p271 = scmp.lt.s32.totalorder %s21, 3
      %p272 = pnand %p270, %p271
      %p273 = pneg %p272
      // Predicated region
      $region9: #{tpu_custom_call.1} parent=5 // pred_check
        _
      $region10: #{tpu_custom_call.1} parent=5 // pred_check_branch
        %275 = sbr.rel (%p272) target = $region12
      $region11: #{tpu_custom_call.1} parent=5 // pred_region
        %s276 = ssub.s32 %s21, 1
        // Predicated region
        $region13: #{tpu_custom_call.1} parent=11 // pred_check
          %p277 = pneg %p68
        $region14: #{tpu_custom_call.1} parent=11 // pred_check_branch
          %279 = sbr.rel (%p277) target = $region16
        $region15: #{tpu_custom_call.1} parent=11 // pred_region
          _
        $region16: #{tpu_custom_call.1} parent=11 // pred_fallthru
          _
        // Predicated region
        $region17: #{tpu_custom_call.1} parent=11 // pred_check
          %p280 = pneg %p89
        $region18: #{tpu_custom_call.1} parent=11 // pred_check_branch
          %282 = sbr.rel (%p280) target = $region20
        $region19: #{tpu_custom_call.1} parent=11 // pred_region
          _
        $region20: #{tpu_custom_call.1} parent=11 // pred_fallthru
          _
        // Predicated region
        $region21: #{tpu_custom_call.1} parent=11 // pred_check
          %p283 = pneg %p110
        $region22: #{tpu_custom_call.1} parent=11 // pred_check_branch
          %285 = sbr.rel (%p283) target = $region24
        $region23: #{tpu_custom_call.1} parent=11 // pred_region
          _
        $region24: #{tpu_custom_call.1} parent=11 // pred_fallthru
          _
        // Predicated region
        $region25: #{tpu_custom_call.1} parent=11 // pred_check
          %p286 = pneg %p131
        $region26: #{tpu_custom_call.1} parent=11 // pred_check_branch
          %288 = sbr.rel (%p286) target = $region28
        $region27: #{tpu_custom_call.1} parent=11 // pred_region
          _
        $region28: #{tpu_custom_call.1} parent=11 // pred_fallthru
          _
        // Predicated region
        $region29: #{tpu_custom_call.1} parent=11 // pred_check
          %p289 = pneg %p152
        $region30: #{tpu_custom_call.1} parent=11 // pred_check_branch
          %291 = sbr.rel (%p289) target = $region32
        $region31: #{tpu_custom_call.1} parent=11 // pred_region
          %s293 = ssub.s32 1024, 1024
          %294 = vsyncadd [#allocation3], %s293
          %s295 = sshll.u32 [#allocation2], 4
          %s296 = int_to_ptr.vmem [resolvable:$true] %s295
          %301 = dma.hbm_to_vmem [thread:$0]  %s5, 1024, %s296, [#allocation3], 64, 64, 4
        $region32: #{tpu_custom_call.1} parent=11 // pred_fallthru
          _
        // Predicated region
        $region33: #{tpu_custom_call.1} parent=11 // pred_check
          %p302 = pneg %p173
        $region34: #{tpu_custom_call.1} parent=11 // pred_check_branch
          %304 = sbr.rel (%p302) target = $region36
        $region35: #{tpu_custom_call.1} parent=11 // pred_region
          _
        $region36: #{tpu_custom_call.1} parent=11 // pred_fallthru
          _
        // Predicated region
        $region37: #{tpu_custom_call.1} parent=11 // pred_check
          %p305 = pneg %p194
        $region38: #{tpu_custom_call.1} parent=11 // pred_check_branch
          %307 = sbr.rel (%p305) target = $region40
        $region39: #{tpu_custom_call.1} parent=11 // pred_region
          _
        $region40: #{tpu_custom_call.1} parent=11 // pred_fallthru
          _
        // Predicated region
        $region41: #{tpu_custom_call.1} parent=11 // pred_check
          %p308 = pneg %p215
        $region42: #{tpu_custom_call.1} parent=11 // pred_check_branch
          %310 = sbr.rel (%p308) target = $region44
        $region43: #{tpu_custom_call.1} parent=11 // pred_region
          %s312 = ssub.s32 1024, 1024
          %313 = vsyncadd [#allocation6], %s312
          %s314 = sshll.u32 [#allocation5], 4
          %s315 = int_to_ptr.vmem [resolvable:$true] %s314
          %320 = dma.hbm_to_vmem [thread:$0]  %s8, 1024, %s315, [#allocation6], 64, 64, 4
        $region44: #{tpu_custom_call.1} parent=11 // pred_fallthru
          _
        // Predicated region
        $region45: #{tpu_custom_call.1} parent=11 // pred_check
          %p321 = pneg %p236
        $region46: #{tpu_custom_call.1} parent=11 // pred_check_branch
          %323 = sbr.rel (%p321) target = $region48
        $region47: #{tpu_custom_call.1} parent=11 // pred_region
          _
        $region48: #{tpu_custom_call.1} parent=11 // pred_fallthru
          _
      $region12: #{tpu_custom_call.1} parent=5 // pred_fallthru
        _
      %p324 = scmp.lt.s32.totalorder %s21, 2
      // Predicated region
      $region49: #{tpu_custom_call.1} parent=5 // pred_check
        %p325 = pneg %p324
      $region50: #{tpu_custom_call.1} parent=5 // pred_check_branch
        %327 = sbr.rel (%p325) target = $region52
      $region51: #{tpu_custom_call.1} parent=5 // pred_region
        // Predicated region
        $region53: #{tpu_custom_call.1} parent=51 // pred_check
          %p328 = pneg %p41
        $region54: #{tpu_custom_call.1} parent=51 // pred_check_branch
          %330 = sbr.rel (%p328) target = $region56
        $region55: #{tpu_custom_call.1} parent=51 // pred_region
          %p331 = scmp.lt.s32.totalorder %s21, 1
          %s332 = scalar_select %p331, %s21, 1
          %s333 = smul.addr %s332, 8
          %s334 = scalar_lea.vmem %s0, %s333
        $region56: #{tpu_custom_call.1} parent=51 // pred_fallthru
          _
      $region52: #{tpu_custom_call.1} parent=5 // pred_fallthru
        _
      %p335 = scmp.le.s32.totalorder 1, %s21
      %p336 = scmp.lt.s32.totalorder %s21, 3
      %p337 = pnand %p335, %p336
      %p338 = pneg %p337
      // Predicated region
      $region57: #{tpu_custom_call.1} parent=5 // pred_check
        _
      $region58: #{tpu_custom_call.1} parent=5 // pred_check_branch
        %340 = sbr.rel (%p337) target = $region60
      $region59: #{tpu_custom_call.1} parent=5 // pred_region
        %s341 = ssub.s32 %s21, 1
        // Predicated region
        $region61: #{tpu_custom_call.1} parent=59 // pred_check
          %p342 = pneg %p152
        $region62: #{tpu_custom_call.1} parent=59 // pred_check_branch
          %344 = sbr.rel (%p342) target = $region64
        $region63: #{tpu_custom_call.1} parent=59 // pred_region
          %345 = dma.done [#allocation3], 1024
        $region64: #{tpu_custom_call.1} parent=59 // pred_fallthru
          _
        // Predicated region
        $region65: #{tpu_custom_call.1} parent=59 // pred_check
          %p346 = pneg %p215
        $region66: #{tpu_custom_call.1} parent=59 // pred_check_branch
          %348 = sbr.rel (%p346) target = $region68
        $region67: #{tpu_custom_call.1} parent=59 // pred_region
          %349 = dma.done [#allocation6], 1024
        $region68: #{tpu_custom_call.1} parent=59 // pred_fallthru
          _
        %p350 = scmp.lt.s32.totalorder %s26, 1
        %s351 = scalar_select %p350, %s26, 1
        %s352 = smul.addr %s351, 8
        %s353 = scalar_lea.vmem %s0, %s352
        %p354 = pneg %p47
        %p355 = pneg %p44
        %p356 = pneg %p68
        %p357 = pneg %p65
        %p358 = pneg %p89
        %p359 = pneg %p86
        %p360 = pneg %p110
        %p361 = pneg %p107
        %p362 = pneg %p131
        %p363 = pneg %p128
        %p364 = pneg %p152
        %p365 = pneg %p149
        %p366 = pneg %p173
        %p367 = pneg %p170
        %p368 = pneg %p194
        %p369 = pneg %p191
        %p370 = pneg %p215
        %p371 = pneg %p212
        %p372 = pneg %p236
        %p373 = pneg %p233
        %p374 = pneg %p262
        %p375 = pneg %p259
        %s376 = sand.u32 %s249, 1
        %s377 = scalar_lea.sflag [#allocation4], %s376
        %s378 = sand.u32 %s249, 1
        %s379 = smul.addr %s378, 8
        %s380 = scalar_lea.vmem [#allocation7], %s379
        %p381 = scmp.lt.s32.totalorder %s26, 1
        %s382 = scalar_select %p381, %s26, 1
        %s383 = smul.addr %s382, 8
        %s384 = scalar_lea.vmem %s0, %s383
        %v386 = vld [vmem:[%s384] sm:$0xff]
        %v387 = vld [vmem:[%s1] sm:$0x7]
        %v388 = vld [vmem:[%s2] sm:$0x1]
        %v390 = vlaneseq
        %v391 = vshrl.u32 %v390, 7
        %v392 = vsub.s32 0, %v391
        %v393 = vrot.slane %v388, %v392
        %vm395 = vcmask 23552
        %v397 = vsel %vm395, %v386, 0
        %vm399 = vcmask 1042432
        %v401 = vsel %vm399, %v387, 0
        %403 = vmatprep.subr.mxu0 0.0
        %404 = vmatpush1.msra.mxu0 %v401
        %405 = vmatprep.subr.mxu0 0.0
        %406 = vmatpush1.msra.mxu0 0.0
        %407 = vmatprep.subr.mxu0 0.0
        %408 = vmatpush1.msra.mxu0 0.0
        %409 = vmatprep.subr.mxu0 0.0
        %410 = vmatpush1.msra.mxu0 0.0
        %411 = vmatprep.subr.mxu0 0.0
        %412 = vmatpush1.msra.mxu0 0.0
        %413 = vmatprep.subr.mxu0 0.0
        %414 = vmatpush1.msra.mxu0 0.0
        %415 = vmatprep.subr.mxu0 0.0
        %416 = vmatpush1.msra.mxu0 0.0
        %417 = vmatprep.subr.mxu0 0.0
        %418 = vmatpush1.msra.mxu0 0.0
        %419 = vmatprep.subr.mxu0 0.0
        %420 = vmatpush1.msra.mxu0 0.0
        %421 = vmatprep.subr.mxu0 0.0
        %422 = vmatpush1.msra.mxu0 0.0
        %423 = vmatprep.subr.mxu0 0.0
        %424 = vmatpush1.msra.mxu0 0.0
        %425 = vmatprep.subr.mxu0 0.0
        %426 = vmatpush1.msra.mxu0 0.0
        %427 = vmatprep.subr.mxu0 0.0
        %428 = vmatpush1.msra.mxu0 0.0
        %429 = vmatprep.subr.mxu0 0.0
        %430 = vmatpush1.msra.mxu0 0.0
        %431 = vmatprep.subr.mxu0 0.0
        %432 = vmatpush1.msra.mxu0 0.0
        %433 = vmatprep.subr.mxu0 0.0
        %434 = vmatpush1.msra.mxu0 0.0
        %435 = vmatprep.subr.mxu0 0.0
        %436 = vmatpush1.msra.mxu0 0.0
        %437 = vmatprep.subr.mxu0 0.0
        %438 = vmatpush1.msra.mxu0 0.0
        %439 = vmatprep.subr.mxu0 0.0
        %440 = vmatpush1.msra.mxu0 0.0
        %441 = vmatprep.subr.mxu0 0.0
        %442 = vmatpush1.msra.mxu0 0.0
        %443 = vmatprep.subr.mxu0 0.0
        %444 = vmatpush1.msra.mxu0 0.0
        %445 = vmatprep.subr.mxu0 0.0
        %446 = vmatpush1.msra.mxu0 0.0
        %447 = vmatprep.subr.mxu0 0.0
        %448 = vmatpush1.msra.mxu0 0.0
        %449 = vmatprep.subr.mxu0 0.0
        %450 = vmatpush1.msra.mxu0 0.0
        %451 = vmatprep.subr.mxu0 0.0
        %452 = vmatpush1.msra.mxu0 0.0
        %453 = vmatprep.subr.mxu0 0.0
        %454 = vmatpush1.msra.mxu0 0.0
        %455 = vmatprep.subr.mxu0 0.0
        %456 = vmatpush1.msra.mxu0 0.0
        %457 = vmatprep.subr.mxu0 0.0
        %458 = vmatpush1.msra.mxu0 0.0
        %459 = vmatprep.subr.mxu0 0.0
        %460 = vmatpush1.msra.mxu0 0.0
        %461 = vmatprep.subr.mxu0 0.0
        %462 = vmatpush1.msra.mxu0 0.0
        %463 = vmatprep.subr.mxu0 0.0
        %464 = vmatpush1.msra.mxu0 0.0
        %465 = vmatprep.subr.mxu0 0.0
        %466 = vmatpush1.msra.mxu0 0.0
        %467 = vmatprep.mubr.f32.mxu0 0.0
        %468 = vmatmul.mubr.f32.gmra.mrb[0].mxu0 %v397
        %v469 = vpop.f32.mrb[0].mxu0
        %v470 = vadd.f32 %v393, %v469
        %v471 = vpop.f32.mrb[0].mxu0
        %472 = vdwg.mxu0
        %v473 = vand.u32 2147483647, %v470
        %vm474 = vcmp.le.f32.partialorder %v473, 0.7853982
        %vm475 = vcmp.lt.s32.totalorder %v470, 0
        %v476 = vand.u32 %v470, 2139095040
        %v477 = vshrl.u32 %v476, 23
        %v478 = vsub.s32 %v477, 127
        %v479 = vand.u32 2147483647, %v470
        %v480 = vand.u32 %v479, 8388607
        %v481 = vor.u32 %v480, 8388608
        %v482 = vsub.s32 0, %v481
        %v483 = vadd.s32 %v478, 1
        %vm484 = vcmp.gt.s32.totalorder %v483, 0
        %v485 = vsel %vm484, %v483, 0
        %v486 = vshrl.u32 %v485, 5
        %v487 = vand.u32 %v485, 31
        %v488 = vsub.s32 32, %v487
        %v489 = vshrl.u32 683565275, %v488
        %v490 = vshll.u32 683565275, %v487
        %v491 = vshrl.u32 2475754826, %v488
        %v492 = vor.u32 %v490, %v491
        %v493 = vshll.u32 2475754826, %v487
        %v494 = vshrl.u32 2131351028, %v488
        %v495 = vor.u32 %v493, %v494
        %v496 = vshll.u32 2131351028, %v487
        %v497 = vshrl.u32 2102212464, %v488
        %v498 = vor.u32 %v496, %v497
        %v499 = vshll.u32 2102212464, %v487
        %v500 = vshrl.u32 920167782, %v488
        %v501 = vor.u32 %v499, %v500
        %v502 = vshll.u32 920167782, %v487
        %v503 = vshrl.u32 1326507024, %v488
        %v504 = vor.u32 %v502, %v503
        %vm505 = vcmp.lt.s32.totalorder %v486, 1
        %vm506 = vcmp.lt.s32.totalorder %v486, 2
        %vm507 = vcmp.lt.s32.totalorder %v486, 3
        %vm508 = vcmp.lt.s32.totalorder %v486, 4
        %v509 = vsel %vm505, %v489, %v492
        %v510 = vsel %vm508, %v498, 2102212464
        %v511 = vsel %vm507, %v495, %v510
        %v512 = vsel %vm506, %v509, %v511
        %v513 = vsel %vm505, %v492, %v495
        %v514 = vsel %vm508, %v501, 920167782
        %v515 = vsel %vm507, %v498, %v514
        %v516 = vsel %vm506, %v513, %v515
        %v517 = vsel %vm505, %v495, %v498
        %v518 = vsel %vm508, %v504, 1326507024
        %v519 = vsel %vm507, %v501, %v518
        %v520 = vsel %vm506, %v517, %v519
        %v521 = vshll.u32 %v481, 8
        %v522 = vmul.u32.u64.compose %v521, %v520
        %v523 = vextract.low.u32 %v522
        %v524 = vextract.high.u32 %v522
        %v525 = vmul.u32.u64.compose %v521, %v516
        %v526 = vextract.low.u32 %v525
        %v527 = vextract.high.u32 %v525
        %v528 = vmul.u32 %v521, %v512
        %v529 = vadd.s32 %v524, %v526
        %vm530 = vc.u32 %v524, %v526
        %v531 = vadd.s32 %v527, 1
        %v532 = vsel %vm530, %v531, %v527
        %v533 = vadd.s32 %v528, %v532
        %v534 = vadd.s32 %v533, 536870912
        %v535 = vshrl.u32 %v534, 30
        %v536 = vshll.u32 %v535, 30
        %v537 = vsub.s32 %v533, %v536
        %vm538 = vcmp.lt.s32.totalorder %v537, 0
        %v539 = vsub.s32 0, %v537
        %v540 = vsel %vm538, %v539, %v537
        %v541 = vclz %v540
        %v542 = vsub.s32 %v541, 2
        %vm543 = vcmp.gt.s32.totalorder 0, %v542
        %v544 = vsel %vm543, 0, %v542
        %v545 = vsub.s32 32, %v544
        %v546 = vshll.u32 %v537, %v544
        %v547 = vshrl.u32 %v529, %v545
        %v548 = vor.u32 %v546, %v547
        %v549 = vsub.s32 4294967266, %v544
        %v550 = vadd.s32 %v549, 127
        %v551 = vshll.u32 %v550, 23
        %v552 = vor.u32 4788187, %v551
        %v553 = vand.u32 2147483647, %v552
        %v555 = vcvt.s32.f32 %v548
        %v556 = vmul.f32 %v555, %v553
        %v557 = vxor.u32 %v556, 2147483648
        %v558 = vsel %vm475, %v557, %v556
        %v559 = vsub.s32 4, %v535
        %v560 = vsel %vm475, %v559, %v535
        %v561 = vsel %vm474, %v470, %v558
        %v562 = vsel %vm474, 0, %v560
        %v563 = vcosq.f32.pop %v561
        %v564 = vsinq.f32.pop %v561
        %vm565 = vweird.f32 %v470
        %v566 = vadd.s32 %v562, 3
        %v567 = vand.u32 %v566, 3
        %vm568 = vcmp.lt.s32.totalorder %v567, 2
        %vm569 = vcmp.eq.s32.totalorder %v567, 0
        %v570 = vxor.u32 %v564, 2147483648
        %v571 = vsel %vm569, %v563, %v570
        %vm572 = vcmp.eq.s32.totalorder %v567, 2
        %v573 = vxor.u32 %v563, 2147483648
        %v574 = vsel %vm572, %v573, %v564
        %v575 = vsel %vm568, %v571, %v574
        %v576 = vsel %vm565, nan, %v575
        %v577 = vpack.c.bf16 %v576, %v576
        %v578 = vpack.c.bf16 %v386, %v386
        %v579 = vld [vmem:[%s3] sm:$0x3]
        %v580 = vld [vmem:[%s4] sm:$0x1]
        %v582 = vlaneseq
        %v583 = vshrl.u32 %v582, 7
        %v584 = vsub.s32 0, %v583
        %v585 = vrot.slane %v580, %v584
        %v588 = vsel %vm395, %v578, 0
        %vm590 = vcmask 1040384
        %vm591 = vcmask 1041408
        %v592 = vsel %vm590, 4294967295, 65535
        %v593 = vsel %vm591, %v592, 0
        %v595 = vand.u32 %v579, %v593
        %597 = vmatprep.subr.bf16.mxu0 0
        %598 = vmatpush1.bf16.msra.mxu0 %v595
        %599 = vmatprep.subr.bf16.mxu0 0
        %600 = vmatpush1.bf16.msra.mxu0 0
        %601 = vmatprep.subr.bf16.mxu0 0
        %602 = vmatpush1.bf16.msra.mxu0 0
        %603 = vmatprep.subr.bf16.mxu0 0
        %604 = vmatpush1.bf16.msra.mxu0 0
        %605 = vmatprep.subr.bf16.mxu0 0
        %606 = vmatpush1.bf16.msra.mxu0 0
        %607 = vmatprep.subr.bf16.mxu0 0
        %608 = vmatpush1.bf16.msra.mxu0 0
        %609 = vmatprep.subr.bf16.mxu0 0
        %610 = vmatpush1.bf16.msra.mxu0 0
        %611 = vmatprep.subr.bf16.mxu0 0
        %612 = vmatpush1.bf16.msra.mxu0 0
        %613 = vmatprep.subr.bf16.mxu0 0
        %614 = vmatpush1.bf16.msra.mxu0 0
        %615 = vmatprep.subr.bf16.mxu0 0
        %616 = vmatpush1.bf16.msra.mxu0 0
        %617 = vmatprep.subr.bf16.mxu0 0
        %618 = vmatpush1.bf16.msra.mxu0 0
        %619 = vmatprep.subr.bf16.mxu0 0
        %620 = vmatpush1.bf16.msra.mxu0 0
        %621 = vmatprep.subr.bf16.mxu0 0
        %622 = vmatpush1.bf16.msra.mxu0 0
        %623 = vmatprep.subr.bf16.mxu0 0
        %624 = vmatpush1.bf16.msra.mxu0 0
        %625 = vmatprep.subr.bf16.mxu0 0
        %626 = vmatpush1.bf16.msra.mxu0 0
        %627 = vmatprep.subr.bf16.mxu0 0
        %628 = vmatpush1.bf16.msra.mxu0 0
        %629 = vmatprep.mubr.bf16.mxu0 0
        %630 = vmatmul.mubr.bf16.gmra.mrb[0].mxu0 %v588
        %v631 = vpop.f32.mrb[0].mxu0
        %v632 = vadd.f32 %v585, %v631
        %v633 = vpop.f32.mrb[0].mxu0
        %v634 = vpop.f32.mrb[0].mxu0
        %v635 = vpop.f32.mrb[0].mxu0
        %636 = vdwg.mxu0
        %v637 = vld [vmem:[#allocation2] sm:$0xf]
        %v638 = vld [vmem:[#allocation2 + $0x4] sm:$0xf]
        %v639 = vld [vmem:[#allocation2 + $0x8] sm:$0xf]
        %v640 = vld [vmem:[#allocation2 + $0xc] sm:$0xf]
        %v641 = vld [vmem:[#allocation2 + $0x10] sm:$0xf]
        %v642 = vld [vmem:[#allocation2 + $0x14] sm:$0xf]
        %v643 = vld [vmem:[#allocation2 + $0x18] sm:$0xf]
        %v644 = vld [vmem:[#allocation2 + $0x1c] sm:$0xf]
        %v645 = vld [vmem:[#allocation2 + $0x20] sm:$0xf]
        %v646 = vld [vmem:[#allocation2 + $0x24] sm:$0xf]
        %v647 = vld [vmem:[#allocation2 + $0x28] sm:$0xf]
        %v648 = vld [vmem:[#allocation2 + $0x2c] sm:$0xf]
        %v649 = vld [vmem:[#allocation2 + $0x30] sm:$0xf]
        %v650 = vld [vmem:[#allocation2 + $0x34] sm:$0xf]
        %v651 = vld [vmem:[#allocation2 + $0x38] sm:$0xf]
        %v652 = vld [vmem:[#allocation2 + $0x3c] sm:$0xf]
        %v669 = vunpack.c.l.b16 %v637
        %v670 = vunpack.c.l.b16 %v638
        %v671 = vunpack.c.l.b16 %v639
        %v672 = vunpack.c.l.b16 %v640
        %v673 = vunpack.c.l.b16 %v641
        %v674 = vunpack.c.l.b16 %v642
        %v675 = vunpack.c.l.b16 %v643
        %v676 = vunpack.c.l.b16 %v644
        %v677 = vunpack.c.l.b16 %v645
        %v678 = vunpack.c.l.b16 %v646
        %v679 = vunpack.c.l.b16 %v647
        %v680 = vunpack.c.l.b16 %v648
        %v681 = vunpack.c.l.b16 %v649
        %v682 = vunpack.c.l.b16 %v650
        %v683 = vunpack.c.l.b16 %v651
        %v684 = vunpack.c.l.b16 %v652
        %v685 = vpack.c.b16 %v670, %v669
        %v686 = vpack.c.b16 %v672, %v671
        %v687 = vpack.c.b16 %v674, %v673
        %v688 = vpack.c.b16 %v676, %v675
        %v689 = vpack.c.b16 %v678, %v677
        %v690 = vpack.c.b16 %v680, %v679
        %v691 = vpack.c.b16 %v682, %v681
        %v692 = vpack.c.b16 %v684, %v683
        %701 = vmatprep.subr.bf16.mxu0 0
        %702 = vmatpush1.bf16.msra.mxu0 %v685
        %703 = vmatprep.subr.bf16.mxu0 0
        %704 = vmatpush1.bf16.msra.mxu0 %v686
        %705 = vmatprep.subr.bf16.mxu0 0
        %706 = vmatpush1.bf16.msra.mxu0 %v687
        %707 = vmatprep.subr.bf16.mxu0 0
        %708 = vmatpush1.bf16.msra.mxu0 %v688
        %709 = vmatprep.subr.bf16.mxu0 0
        %710 = vmatpush1.bf16.msra.mxu0 %v689
        %711 = vmatprep.subr.bf16.mxu0 0
        %712 = vmatpush1.bf16.msra.mxu0 %v690
        %713 = vmatprep.subr.bf16.mxu0 0
        %714 = vmatpush1.bf16.msra.mxu0 %v691
        %715 = vmatprep.subr.bf16.mxu0 0
        %716 = vmatpush1.bf16.msra.mxu0 %v692
        %717 = vmatprep.subr.bf16.mxu0 0
        %718 = vmatpush1.bf16.msra.mxu0 0
        %719 = vmatprep.subr.bf16.mxu0 0
        %720 = vmatpush1.bf16.msra.mxu0 0
        %721 = vmatprep.subr.bf16.mxu0 0
        %722 = vmatpush1.bf16.msra.mxu0 0
        %723 = vmatprep.subr.bf16.mxu0 0
        %724 = vmatpush1.bf16.msra.mxu0 0
        %725 = vmatprep.subr.bf16.mxu0 0
        %726 = vmatpush1.bf16.msra.mxu0 0
        %727 = vmatprep.subr.bf16.mxu0 0
        %728 = vmatpush1.bf16.msra.mxu0 0
        %729 = vmatprep.subr.bf16.mxu0 0
        %730 = vmatpush1.bf16.msra.mxu0 0
        %731 = vmatprep.subr.bf16.mxu0 0
        %732 = vmatpush1.bf16.msra.mxu0 0
        %733 = vmatprep.mubr.bf16.mxu0 0
        %734 = vmatmul.mubr.bf16.gmra.mrb[0].mxu0 %v577
        %v735 = vpop.f32.mrb[0].mxu0
        %v736 = vadd.f32 0.0, %v735
        %v737 = vpop.f32.mrb[0].mxu0
        %v738 = vpop.f32.mrb[0].mxu0
        %v739 = vpop.f32.mrb[0].mxu0
        %740 = vdwg.mxu0
        %v741 = vadd.f32 %v632, %v736
        %742 = vadd.xlane.f32.xlu0 %v741
        %v743 = vpop.xlane.xlu0 %742
        %v744 = vrcp.pop 128.0
        %v745 = vmul.f32 %v743, %v744
        %v746 = vsub.f32 %v741, %v745
        %v747 = vmul.f32 %v746, %v746
        %748 = vadd.xlane.f32.xlu0 %v747
        %v749 = vpop.xlane.xlu0 %748
        %v750 = vmul.f32 %v749, %v744
        %v751 = vadd.f32 %v750, 1e-05
        %v752 = vrsqrt.pop %v751
        %v753 = vmul.f32 %v746, %v752
        %v754 = vld [vmem:[%s6] sm:$0x1]
        %v756 = vlaneseq
        %v757 = vshrl.u32 %v756, 7
        %v758 = vsub.s32 0, %v757
        %v759 = vrot.slane %v754, %v758
        %v761 = vmul.f32 %v753, %v759
        %v762 = vld [vmem:[%s7] sm:$0x1]
        %v764 = vlaneseq
        %v765 = vshrl.u32 %v764, 7
        %v766 = vsub.s32 0, %v765
        %v767 = vrot.slane %v762, %v766
        %v769 = vadd.f32 %v761, %v767
        %v770 = vmax.f32 %v769, 0.0
        %v771 = vpack.c.bf16 %v770, %v770
        %v772 = vld [vmem:[#allocation5] sm:$0xf]
        %v773 = vld [vmem:[#allocation5 + $0x4] sm:$0xf]
        %v774 = vld [vmem:[#allocation5 + $0x8] sm:$0xf]
        %v775 = vld [vmem:[#allocation5 + $0xc] sm:$0xf]
        %v776 = vld [vmem:[#allocation5 + $0x10] sm:$0xf]
        %v777 = vld [vmem:[#allocation5 + $0x14] sm:$0xf]
        %v778 = vld [vmem:[#allocation5 + $0x18] sm:$0xf]
        %v779 = vld [vmem:[#allocation5 + $0x1c] sm:$0xf]
        %v780 = vld [vmem:[#allocation5 + $0x20] sm:$0xf]
        %v781 = vld [vmem:[#allocation5 + $0x24] sm:$0xf]
        %v782 = vld [vmem:[#allocation5 + $0x28] sm:$0xf]
        %v783 = vld [vmem:[#allocation5 + $0x2c] sm:$0xf]
        %v784 = vld [vmem:[#allocation5 + $0x30] sm:$0xf]
        %v785 = vld [vmem:[#allocation5 + $0x34] sm:$0xf]
        %v786 = vld [vmem:[#allocation5 + $0x38] sm:$0xf]
        %v787 = vld [vmem:[#allocation5 + $0x3c] sm:$0xf]
        %v788 = vld [vmem:[%s9] sm:$0x1]
        %v790 = vlaneseq
        %v791 = vshrl.u32 %v790, 7
        %v792 = vsub.s32 0, %v791
        %v793 = vrot.slane %v788, %v792
        %v811 = vunpack.c.l.b16 %v772
        %v812 = vunpack.c.l.b16 %v773
        %v813 = vunpack.c.l.b16 %v774
        %v814 = vunpack.c.l.b16 %v775
        %v815 = vunpack.c.l.b16 %v776
        %v816 = vunpack.c.l.b16 %v777
        %v817 = vunpack.c.l.b16 %v778
        %v818 = vunpack.c.l.b16 %v779
        %v819 = vunpack.c.l.b16 %v780
        %v820 = vunpack.c.l.b16 %v781
        %v821 = vunpack.c.l.b16 %v782
        %v822 = vunpack.c.l.b16 %v783
        %v823 = vunpack.c.l.b16 %v784
        %v824 = vunpack.c.l.b16 %v785
        %v825 = vunpack.c.l.b16 %v786
        %v826 = vunpack.c.l.b16 %v787
        %v827 = vpack.c.b16 %v812, %v811
        %v828 = vpack.c.b16 %v814, %v813
        %v829 = vpack.c.b16 %v816, %v815
        %v830 = vpack.c.b16 %v818, %v817
        %v831 = vpack.c.b16 %v820, %v819
        %v832 = vpack.c.b16 %v822, %v821
        %v833 = vpack.c.b16 %v824, %v823
        %v834 = vpack.c.b16 %v826, %v825
        %843 = vmatprep.subr.bf16.mxu0 0
        %844 = vmatpush1.bf16.msra.mxu0 %v827
        %845 = vmatprep.subr.bf16.mxu0 0
        %846 = vmatpush1.bf16.msra.mxu0 %v828
        %847 = vmatprep.subr.bf16.mxu0 0
        %848 = vmatpush1.bf16.msra.mxu0 %v829
        %849 = vmatprep.subr.bf16.mxu0 0
        %850 = vmatpush1.bf16.msra.mxu0 %v830
        %851 = vmatprep.subr.bf16.mxu0 0
        %852 = vmatpush1.bf16.msra.mxu0 %v831
        %853 = vmatprep.subr.bf16.mxu0 0
        %854 = vmatpush1.bf16.msra.mxu0 %v832
        %855 = vmatprep.subr.bf16.mxu0 0
        %856 = vmatpush1.bf16.msra.mxu0 %v833
        %857 = vmatprep.subr.bf16.mxu0 0
        %858 = vmatpush1.bf16.msra.mxu0 %v834
        %859 = vmatprep.subr.bf16.mxu0 0
        %860 = vmatpush1.bf16.msra.mxu0 0
        %861 = vmatprep.subr.bf16.mxu0 0
        %862 = vmatpush1.bf16.msra.mxu0 0
        %863 = vmatprep.subr.bf16.mxu0 0
        %864 = vmatpush1.bf16.msra.mxu0 0
        %865 = vmatprep.subr.bf16.mxu0 0
        %866 = vmatpush1.bf16.msra.mxu0 0
        %867 = vmatprep.subr.bf16.mxu0 0
        %868 = vmatpush1.bf16.msra.mxu0 0
        %869 = vmatprep.subr.bf16.mxu0 0
        %870 = vmatpush1.bf16.msra.mxu0 0
        %871 = vmatprep.subr.bf16.mxu0 0
        %872 = vmatpush1.bf16.msra.mxu0 0
        %873 = vmatprep.subr.bf16.mxu0 0
        %874 = vmatpush1.bf16.msra.mxu0 0
        %875 = vmatprep.mubr.bf16.mxu0 0
        %876 = vmatmul.mubr.bf16.gmra.mrb[0].mxu0 %v771
        %v877 = vpop.f32.mrb[0].mxu0
        %v878 = vadd.f32 %v793, %v877
        %v879 = vpop.f32.mrb[0].mxu0
        %v880 = vpop.f32.mrb[0].mxu0
        %v881 = vpop.f32.mrb[0].mxu0
        %882 = vdwg.mxu0
        %883 = vst [vmem:[%s380] sm:$0xff] %v878
        %s884 = sand.u32 %s249, 1
        %s885 = scalar_lea.sflag [#allocation4], %s884
        %s886 = sand.u32 %s249, 1
        %s887 = smul.addr %s886, 8
        %s888 = scalar_lea.vmem [#allocation7], %s887
        // Predicated region
        $region69: #{tpu_custom_call.1} parent=59 // pred_check
          %p889 = pneg %p259
        $region70: #{tpu_custom_call.1} parent=59 // pred_check_branch
          %891 = sbr.rel (%p889) target = $region72
        $region71: #{tpu_custom_call.1} parent=59 // pred_region
          %s893 = ssub.s32 128, 128
          %894 = vsyncadd %s885, %s893
          %s895 = smul.addr %s26, 128
          %s896 = scalar_lea.hbm %s10, %s895
          %s898 = sshll.u32 %s888, 4
          %s899 = int_to_ptr.vmem [resolvable:$true] %s898
          %901 = dma.vmem_to_hbm [thread:$0]  %s899, 128, %s896, %s885
        $region72: #{tpu_custom_call.1} parent=59 // pred_fallthru
          _
      $region60: #{tpu_custom_call.1} parent=5 // pred_fallthru
        _
      %p902 = scmp.le.s32.totalorder 2, %s21
      // Predicated region
      $region73: #{tpu_custom_call.1} parent=5 // pred_check
        %p903 = pneg %p902
      $region74: #{tpu_custom_call.1} parent=5 // pred_check_branch
        %905 = sbr.rel (%p903) target = $region76
      $region75: #{tpu_custom_call.1} parent=5 // pred_region
        %s906 = ssub.s32 %s21, 2
        // Predicated region
        $region77: #{tpu_custom_call.1} parent=75 // pred_check
          %p907 = pneg %p265
        $region78: #{tpu_custom_call.1} parent=75 // pred_check_branch
          %909 = sbr.rel (%p907) target = $region80
        $region79: #{tpu_custom_call.1} parent=75 // pred_region
          %s910 = sand.u32 %s250, 1
          %s911 = scalar_lea.sflag [#allocation4], %s910
          %s912 = sand.u32 %s250, 1
          %s913 = smul.addr %s912, 8
          %s914 = scalar_lea.vmem [#allocation7], %s913
          %915 = dma.done %s911, 128
        $region80: #{tpu_custom_call.1} parent=75 // pred_fallthru
          _
      $region76: #{tpu_custom_call.1} parent=5 // pred_fallthru
        _
    $region6: #{tpu_custom_call.1} parent=1 // loop_footer
      %s25 = sadd.s32 1, %s21
    $region7: #{tpu_custom_call.1} parent=1 // loop_footer_branch
      %20 = sbr.rel target = $region3
    $region8: #{tpu_custom_call.1} parent=1 // loop_exit
      _
    %916 = vsyncpa [#allocation3], 1
    %s917 = scalar_lea.sflag [#allocation3], 1
    %918 = vsyncpa %s917, 1
    %919 = vsyncpa [#allocation6], 1
    %920 = vsyncpa [#allocation4], 1
    %s921 = scalar_lea.sflag [#allocation4], 1
    %922 = vsyncpa %s921, 1

</llo_original>
